<compile_context>
chip_gen: v5e
topology: v5e:2x2
jax: 0.10.0
libtpu: 0.0.40
codegen_flags: <defaults>
</compile_context>

<pallas_src>
import jax
import jax.numpy as jnp
from jax.experimental import pallas as pl
from jax.experimental.pallas import tpu as pltpu


def _linear2_logsoftmax_kernel(x_ref, w_ref, b_ref, o_ref):
    # x_ref: (TB, D) f32   w_ref: (1, D) f32 (= w0 - w1)   b_ref: (1,) SMEM
    x = x_ref[...]
    w = w_ref[...]
    b = b_ref[0]
    # Logit difference d = z0 - z1, shape (TB, 1).  VPU multiply + lane reduce.
    d = jnp.sum(x * w, axis=-1, keepdims=True) + b
    # Numerically stable softplus(d) = max(d,0) + log1p(exp(-|d|))  (VPU + EUP).
    sp = jnp.maximum(d, 0.0) + jnp.log1p(jnp.exp(-jnp.abs(d)))
    # log_softmax([z0, z1]) = [-softplus(-d), -softplus(d)] = [d - sp, -sp].
    o_ref[...] = jnp.concatenate([d - sp, -sp], axis=-1)


def _pick_batch_tile(B):
    # Largest multiple-of-8 tile dividing B, capped at 512 (VMEM-safe on v7x
    # even for large D: 2 * 512 * D * 4B << 32 MiB scoped limit for D <= 4096).
    for cand in (512, 256, 128, 64, 32, 16, 8):
        if B % cand == 0:
            return cand
    return B  # falls back to full-array block (handles B not multiple of 8)


def face_attribute_decoder_6vsall(x, w, b, mask, block_b=None):
    """x: (B, D) f32, w: (2, D) f32 (PyTorch nn.Linear layout), b: (2,) f32.

    Returns (log_softmax(x @ w.T + b, axis=1), mask).
    """
    B, D = x.shape
    # Collapse the 2-class linear into a single difference dot.
    w_diff = (w[0] - w[1]).reshape(1, D).astype(jnp.float32)   # lane-dense row
    b_diff = (b[0] - b[1]).reshape(1).astype(jnp.float32)      # SMEM scalar

    tb = block_b if block_b is not None else _pick_batch_tile(B)
    assert B % tb == 0, "batch tile must divide B"

    out = pl.pallas_call(
        _linear2_logsoftmax_kernel,
        out_shape=jax.ShapeDtypeStruct((B, 2), jnp.float32),
        grid=(B // tb,),
        in_specs=[
            pl.BlockSpec((tb, D), lambda i: (i, 0)),           # x tile
            pl.BlockSpec((1, D), lambda i: (0, 0)),            # w_diff (const)
            pl.BlockSpec(memory_space=pltpu.SMEM),             # b_diff scalar
        ],
        out_specs=pl.BlockSpec((tb, 2), lambda i: (i, 0)),
        compiler_params=pltpu.CompilerParams(
            dimension_semantics=("parallel",)),
    )(x, w_diff, b_diff)
    return out, mask


if __name__ == "__main__":
    # Small shapes consistent with the module: batch=16, dim=128, 2 classes.
    B, D, N_CLS = 16, 128, 2

    key = jax.random.PRNGKey(0)
    kx, kw, kb, km = jax.random.split(key, 4)

    x = jax.random.normal(kx, (B, D), dtype=jnp.float32)
    # nn.Linear(dim, 2) parameter shapes.
    w = jax.random.normal(kw, (N_CLS, D), dtype=jnp.float32) * 0.05
    b = jax.random.normal(kb, (N_CLS,), dtype=jnp.float32) * 0.05
    mask = jax.random.bernoulli(km, 0.5, (B,)).astype(jnp.float32)

    # block_b=8 exercises the multi-tile grid path (grid=(2,)) at small B.
    out, mask_out = face_attribute_decoder_6vsall(x, w, b, mask, block_b=8)
    out = jax.block_until_ready(out)
    mask_out = jax.block_until_ready(mask_out)

    # Pure-JAX reference check.
    ref = jax.nn.log_softmax(x @ w.T + b, axis=1)
    assert out.shape == (B, N_CLS)
    assert jnp.allclose(out, ref, atol=1e-5, rtol=1e-5), "mismatch vs reference"
    assert jnp.array_equal(mask_out, mask)

    print("KERNEL_OK")
</pallas_src>

<mosaic_0001>
module attributes {stable_mosaic.version = 11 : i64} {
  func.func @_linear2_logsoftmax_kernel(%arg0: i32, %arg1: memref<8x128xf32, #tpu.memory_space<vmem>>, %arg2: memref<1x128xf32, #tpu.memory_space<vmem>>, %arg3: memref<1xf32, #tpu.memory_space<smem>>, %arg4: memref<8x2xf32, #tpu.memory_space<vmem>>) attributes {dimension_semantics = [#tpu.dimension_semantics<parallel>], iteration_bounds = array<i64: 2>, scalar_prefetch = 0 : i64, scratch_operands = 0 : i64, tpu.core_type = #tpu.core_type<tc>, window_params = [{transform_indices = @transform_0, window_bounds = array<i64: 8, 128>}, {pipeline_mode = #tpu.pipeline_mode<synchronous>, transform_indices = @transform_1, window_bounds = array<i64: 1, 128>}, {transform_indices = @transform_2, window_bounds = array<i64: 1>}, {transform_indices = @transform_3, window_bounds = array<i64: 8, 2>}]} {
    %c0 = arith.constant 0 : index
    %c0_0 = arith.constant 0 : index
    %0 = vector.load %arg1[%c0, %c0_0] : memref<8x128xf32, #tpu.memory_space<vmem>>, vector<8x128xf32>
    %c0_1 = arith.constant 0 : index
    %c0_2 = arith.constant 0 : index
    %1 = vector.load %arg2[%c0_1, %c0_2] : memref<1x128xf32, #tpu.memory_space<vmem>>, vector<1x128xf32>
    %c0_3 = arith.constant 0 : index
    %2 = memref.load %arg3[%c0_3] : memref<1xf32, #tpu.memory_space<smem>>
    %3 = vector.broadcast %1 : vector<1x128xf32> to vector<8x128xf32>
    %4 = arith.mulf %0, %3 : vector<8x128xf32>
    %cst = arith.constant dense<0.000000e+00> : vector<8xf32>
    %5 = vector.multi_reduction <add>, %4, %cst [1] : vector<8x128xf32> to vector<8xf32>
    %6 = vector.shape_cast %5 : vector<8xf32> to vector<8x1xf32>
    %7 = vector.broadcast %2 : f32 to vector<8x1xf32>
    %8 = arith.addf %6, %7 : vector<8x1xf32>
    %cst_4 = arith.constant 0.000000e+00 : f32
    %9 = vector.broadcast %cst_4 : f32 to vector<8x1xf32>
    %10 = arith.maximumf %8, %9 : vector<8x1xf32>
    %11 = math.absf %8 : vector<8x1xf32>
    %cst_5 = arith.constant 0.000000e+00 : f32
    %12 = vector.broadcast %cst_5 : f32 to vector<8x1xf32>
    %13 = arith.subf %12, %11 : vector<8x1xf32>
    %14 = math.exp %13 : vector<8x1xf32>
    %15 = math.log1p %14 : vector<8x1xf32>
    %16 = arith.addf %10, %15 : vector<8x1xf32>
    %17 = arith.subf %8, %16 : vector<8x1xf32>
    %cst_6 = arith.constant 0.000000e+00 : f32
    %18 = vector.broadcast %cst_6 : f32 to vector<8x1xf32>
    %19 = arith.subf %18, %16 : vector<8x1xf32>
    %20 = tpu.concatenate %17, %19 in 1 : vector<8x1xf32>, vector<8x1xf32> -> vector<8x2xf32>
    %c0_7 = arith.constant 0 : index
    %c0_8 = arith.constant 0 : index
    %21 = vector.load %arg4[%c0_7, %c0_8] : memref<8x2xf32, #tpu.memory_space<vmem>>, vector<8x2xf32>
    tpu.vector_store %arg4[%c0_7, %c0_8], %20 {strides = array<i32>} : memref<8x2xf32, #tpu.memory_space<vmem>>, vector<8x2xf32>,
    return
  }
  func.func @transform_0(%arg0: i32) -> (i32, i32) {
    %c0_i32 = arith.constant 0 : i32
    %c0_i32_0 = arith.constant 0 : i32
    return %arg0, %c0_i32 : i32, i32
  }
  func.func @transform_1(%arg0: i32) -> (i32, i32) {
    %c0_i32 = arith.constant 0 : i32
    %c0_i32_0 = arith.constant 0 : i32
    %c0_i32_1 = arith.constant 0 : i32
    return %c0_i32, %c0_i32_0 : i32, i32
  }
  func.func @transform_2(%arg0: i32) -> i32 {
    %c0_i32 = arith.constant 0 : i32
    %c0_i32_0 = arith.constant 0 : i32
    return %c0_i32 : i32
  }
  func.func @transform_3(%arg0: i32) -> (i32, i32) {
    %c0_i32 = arith.constant 0 : i32
    %c0_i32_0 = arith.constant 0 : i32
    return %arg0, %c0_i32 : i32, i32
  }
}

</mosaic_0001>

<llo_original>
// kernel: tpu_custom_call.1
$region0: #{tpu_custom_call.1}
  #allocation0 [shape = 'u32[]', space=smem, size = 0x4, offset = 0x4, fixed_abs, tag = 'smem constant byte address 0x4 - core index']
  #allocation1 [shape = 'u32[72,128]{1,0:T(1,128)}', space=vmem, size = 0x9000, scoped, tag = 'internal scratch']
  #allocation2 [shape = 'f32[1]{0:T(128)S(6)}', space=smem, size = 0x200, scoped, tag = 'scoped memory for tpu_custom_call.1']
  %s0 = inlined_call_operand.hbm [shape: f32[16,128], index: 0, kind: input, shape index: {}]
  %s1 = inlined_call_operand.vmem [shape: f32[1,128], index: 1, kind: input, shape index: {}]
  %s2 = inlined_call_operand.<no memory space> [shape: f32[1], index: 2, kind: input, shape index: {}]
  %s3 = inlined_call_operand.vmem [shape: f32[16,2], index: 3, kind: output, shape index: {}]
  %s4 = sld [smem:[#allocation0]]
  $region49: #{tpu_custom_call.1} parent=0
    _
  %s6 = ssub.s32 1, %s4
  %s7 = scalar_select 0, %s6, %s4
  %8 = sst [smem:[#allocation2]] %s2
  $region1: #{tpu_custom_call.1} parent=0
    #allocation3 [shape = 'u8[8192]{0}', space=vmem, size = 0x2000, scoped, tag = 'input window, operand 0']
    #allocation4 [shape = 's32[2]{0}', space=sflag, size = 0x8, scoped, tag = 'scoped memory for tpu_custom_call.1']
    %9 = vsyncpa [#allocation4], 0
    %s10 = scalar_lea.sflag [#allocation4], 1
    %11 = vsyncpa %s10, 0
    loop: start=0, step=1, limit=4
    $region2: #{tpu_custom_call.1} parent=1 // loop_pre_header
      _
    $region3: #{tpu_custom_call.1} parent=1 // loop_header
      %s13 = sphi 0, %s17
      %p14 = scmp.ge.s32.totalorder %s13, 4
      %s23 = sphi 0, %s25
      %s26 = sphi 0, %s23
      %s27 = sphi 0, %s26
      %s43 = sphi 0, %s27
      %s47 = sphi 0, %s47
      %s49 = sphi 0, %s47
      %s50 = sphi 0, %s49
      %s64 = sphi 0, %s50
      %s68 = sphi 0, %s68
      %s70 = sphi 0, %s68
      %s71 = sphi 0, %s70
      %s85 = sphi 0, %s71
      %s91 = sphi 0, %s93
      %s94 = sphi 0, %s91
      %s95 = sphi 0, %s94
      %s111 = sphi 0, %s95
    $region4: #{tpu_custom_call.1} parent=1 // loop_header_branch
      %16 = sbr.rel (%p14) target = $region8
    $region5: #{tpu_custom_call.1} parent=1 // loop_body
      %s18 = ssub.s32 %s13, 1
      %s19 = ssub.s32 %s13, 2
      %s20 = sadd.s32 %s13, 1
      %s21 = ssub.s32 %s13, %s20
      %p22 = scmp.eq.s32.totalorder %s21, 0
      %s24 = sadd.s32 %s23, 1
      %s25 = scalar_select %p22, %s23, %s24
      %p28 = pneg %p22
      %p29 = scmp.eq.s32.totalorder %s13, 1
      %p30 = por %p28, %p29
      %p31 = scmp.ne.s32.totalorder %s23, %s26
      %p32 = scmp.eq.s32.totalorder %s13, 0
      %p33 = por %p31, %p32
      %p34 = scmp.ne.s32.totalorder %s23, %s26
      %p35 = scmp.eq.s32.totalorder %s18, 1
      %p36 = por %p34, %p35
      %p37 = scmp.ne.s32.totalorder %s26, %s27
      %p38 = scmp.eq.s32.totalorder %s18, 0
      %p39 = por %p37, %p38
      %p40 = scmp.ne.s32.totalorder %s26, %s27
      %p41 = scmp.eq.s32.totalorder %s19, 1
      %p42 = por %p40, %p41
      %p44 = scmp.ne.s32.totalorder %s27, %s43
      %p45 = scmp.eq.s32.totalorder %s19, 0
      %p46 = por %p44, %p45
      %s48 = sadd.s32 %s47, 1
      %p51 = scmp.eq.s32.totalorder %s13, 1
      %p52 = scmp.ne.s32.totalorder %s47, %s49
      %p53 = scmp.eq.s32.totalorder %s13, 0
      %p54 = por %p52, %p53
      %p55 = scmp.ne.s32.totalorder %s47, %s49
      %p56 = scmp.eq.s32.totalorder %s18, 1
      %p57 = por %p55, %p56
      %p58 = scmp.ne.s32.totalorder %s49, %s50
      %p59 = scmp.eq.s32.totalorder %s18, 0
      %p60 = por %p58, %p59
      %p61 = scmp.ne.s32.totalorder %s49, %s50
      %p62 = scmp.eq.s32.totalorder %s19, 1
      %p63 = por %p61, %p62
      %p65 = scmp.ne.s32.totalorder %s50, %s64
      %p66 = scmp.eq.s32.totalorder %s19, 0
      %p67 = por %p65, %p66
      %s69 = sadd.s32 %s68, 1
      %p72 = scmp.eq.s32.totalorder %s13, 1
      %p73 = scmp.ne.s32.totalorder %s68, %s70
      %p74 = scmp.eq.s32.totalorder %s13, 0
      %p75 = por %p73, %p74
      %p76 = scmp.ne.s32.totalorder %s68, %s70
      %p77 = scmp.eq.s32.totalorder %s18, 1
      %p78 = por %p76, %p77
      %p79 = scmp.ne.s32.totalorder %s70, %s71
      %p80 = scmp.eq.s32.totalorder %s18, 0
      %p81 = por %p79, %p80
      %p82 = scmp.ne.s32.totalorder %s70, %s71
      %p83 = scmp.eq.s32.totalorder %s19, 1
      %p84 = por %p82, %p83
      %p86 = scmp.ne.s32.totalorder %s71, %s85
      %p87 = scmp.eq.s32.totalorder %s19, 0
      %p88 = por %p86, %p87
      %s89 = ssub.s32 %s13, %s20
      %p90 = scmp.eq.s32.totalorder %s89, 0
      %s92 = sadd.s32 %s91, 1
      %s93 = scalar_select %p90, %s91, %s92
      %p96 = pneg %p90
      %p97 = scmp.eq.s32.totalorder %s13, 1
      %p98 = por %p96, %p97
      %p99 = scmp.ne.s32.totalorder %s91, %s94
      %p100 = scmp.eq.s32.totalorder %s13, 0
      %p101 = por %p99, %p100
      %p102 = scmp.ne.s32.totalorder %s91, %s94
      %p103 = scmp.eq.s32.totalorder %s18, 1
      %p104 = por %p102, %p103
      %p105 = scmp.ne.s32.totalorder %s94, %s95
      %p106 = scmp.eq.s32.totalorder %s18, 0
      %p107 = por %p105, %p106
      %p108 = scmp.ne.s32.totalorder %s94, %s95
      %p109 = scmp.eq.s32.totalorder %s19, 1
      %p110 = por %p108, %p109
      %p112 = scmp.ne.s32.totalorder %s95, %s111
      %p113 = scmp.eq.s32.totalorder %s19, 0
      %p114 = por %p112, %p113
      %p115 = scmp.le.s32.totalorder 1, %s13
      %p116 = scmp.lt.s32.totalorder %s13, 3
      %p117 = pnand %p115, %p116
      %p118 = pneg %p117
      // Predicated region
      $region9: #{tpu_custom_call.1} parent=5 // pred_check
        _
      $region10: #{tpu_custom_call.1} parent=5 // pred_check_branch
        %120 = sbr.rel (%p117) target = $region12
      $region11: #{tpu_custom_call.1} parent=5 // pred_region
        %s121 = ssub.s32 %s13, 1
        // Predicated region
        $region13: #{tpu_custom_call.1} parent=11 // pred_check
          %p122 = pneg %p60
        $region14: #{tpu_custom_call.1} parent=11 // pred_check_branch
          %124 = sbr.rel (%p122) target = $region16
        $region15: #{tpu_custom_call.1} parent=11 // pred_region
          _
        $region16: #{tpu_custom_call.1} parent=11 // pred_fallthru
          _
        // Predicated region
        $region17: #{tpu_custom_call.1} parent=11 // pred_check
          %p125 = pneg %p81
        $region18: #{tpu_custom_call.1} parent=11 // pred_check_branch
          %127 = sbr.rel (%p125) target = $region20
        $region19: #{tpu_custom_call.1} parent=11 // pred_region
          _
        $region20: #{tpu_custom_call.1} parent=11 // pred_fallthru
          _
      $region12: #{tpu_custom_call.1} parent=5 // pred_fallthru
        _
      %p128 = scmp.lt.s32.totalorder %s13, 2
      // Predicated region
      $region21: #{tpu_custom_call.1} parent=5 // pred_check
        %p129 = pneg %p128
      $region22: #{tpu_custom_call.1} parent=5 // pred_check_branch
        %131 = sbr.rel (%p129) target = $region24
      $region23: #{tpu_custom_call.1} parent=5 // pred_region
        // Predicated region
        $region25: #{tpu_custom_call.1} parent=23 // pred_check
          %p132 = pneg %p33
        $region26: #{tpu_custom_call.1} parent=23 // pred_check_branch
          %134 = sbr.rel (%p132) target = $region28
        $region27: #{tpu_custom_call.1} parent=23 // pred_region
          %s135 = sand.u32 %s23, 1
          %s136 = scalar_lea.sflag [#allocation4], %s135
          %s137 = sand.u32 %s23, 1
          %s138 = smul.addr %s137, 8
          %s139 = scalar_lea.vmem [#allocation3], %s138
          %141 = vsyncadd %s136, 0
          %s142 = smul.addr %s13, 8
          %s143 = scalar_lea.hbm %s0, %s142
          %s145 = sshll.u32 %s143, 4
          %s146 = int_to_ptr.hbm [resolvable:$true] %s145
          %s147 = sshll.u32 %s139, 4
          %s148 = int_to_ptr.vmem [resolvable:$true] %s147
          %150 = dma.hbm_to_vmem [thread:$0]  %s146, 128, %s148, %s136
        $region28: #{tpu_custom_call.1} parent=23 // pred_fallthru
          _
      $region24: #{tpu_custom_call.1} parent=5 // pred_fallthru
        _
      %p151 = scmp.le.s32.totalorder 1, %s13
      %p152 = scmp.lt.s32.totalorder %s13, 3
      %p153 = pnand %p151, %p152
      %p154 = pneg %p153
      // Predicated region
      $region29: #{tpu_custom_call.1} parent=5 // pred_check
        _
      $region30: #{tpu_custom_call.1} parent=5 // pred_check_branch
        %156 = sbr.rel (%p153) target = $region32
      $region31: #{tpu_custom_call.1} parent=5 // pred_region
        %s157 = ssub.s32 %s13, 1
        %s158 = sand.u32 %s26, 1
        %s159 = scalar_lea.sflag [#allocation4], %s158
        %s160 = sand.u32 %s26, 1
        %s161 = smul.addr %s160, 8
        %s162 = scalar_lea.vmem [#allocation3], %s161
        // Predicated region
        $region33: #{tpu_custom_call.1} parent=31 // pred_check
          %p163 = pneg %p39
        $region34: #{tpu_custom_call.1} parent=31 // pred_check_branch
          %165 = sbr.rel (%p163) target = $region36
        $region35: #{tpu_custom_call.1} parent=31 // pred_region
          %167 = dma.done %s159, 128
        $region36: #{tpu_custom_call.1} parent=31 // pred_fallthru
          _
        %s168 = sand.u32 %s26, 1
        %s169 = scalar_lea.sflag [#allocation4], %s168
        %s170 = sand.u32 %s26, 1
        %s171 = smul.addr %s170, 8
        %s172 = scalar_lea.vmem [#allocation3], %s171
        %p173 = pneg %p39
        %p174 = pneg %p36
        %p175 = pneg %p60
        %p176 = pneg %p57
        %p177 = pneg %p81
        %p178 = pneg %p78
        %p179 = pneg %p107
        %p180 = pneg %p104
        %p181 = scmp.lt.s32.totalorder %s18, 1
        %s182 = scalar_select %p181, %s18, 1
        %s183 = smul.addr %s182, 8
        %s184 = scalar_lea.vmem %s3, %s183
        %p185 = scmp.lt.s32.totalorder %s18, 1
        %s186 = scalar_select %p185, %s18, 1
        %s187 = smul.addr %s186, 8
        %s188 = scalar_lea.vmem %s3, %s187
        %v189 = vld [vmem:[%s162] sm:$0xff]
        %v190 = vld [vmem:[%s1] sm:$0x1]
        %s191 = sld [smem:[#allocation2]]
        %v193 = vperm.slane %v190, 0
        %v195 = vmul.f32 %v189, %v193
        %196 = vadd.xlane.f32.xlu0 %v195
        %v197 = vpop.xlane.xlu0 %196
        %v198 = vstv %s191
        %v199 = vadd.f32 %v197, %v198
        %v200 = vmax.f32 %v199, 0.0
        %v201 = vand.u32 2147483647, %v199
        %v202 = vsub.f32 0.0, %v201
        %v203 = vmul.f32 %v202, 1.442695
        %v204 = vpow.pop %v203
        %v205 = vadd.f32 %v204, 1.0
        %v206 = vlog2.pop %v205
        %v207 = vmul.f32 %v206, 0.6931472
        %v208 = vmul.f32 -0.5, %v204
        %v209 = vadd.f32 %v208, 1.0
        %v210 = vmul.f32 %v209, %v204
        %v211 = vand.u32 2147483647, %v204
        %vm212 = vcmp.lt.f32.partialorder %v211, 0.0004427343
        %v213 = vsel %vm212, %v210, %v207
        %v214 = vadd.f32 %v200, %v213
        %v215 = vsub.f32 %v199, %v214
        %v216 = vsub.f32 0.0, %v214
        %vm217 = vcmask 7168
        %v218 = vsel %vm217, %v215, %v216
        %vm219 = vcmask 15360
        %220 = vst.msk [vmem:[%s188] sm:$0xff] %vm219, %v218
        %p221 = scmp.lt.s32.totalorder %s18, 1
        %s222 = scalar_select %p221, %s18, 1
        %s223 = smul.addr %s222, 8
        %s224 = scalar_lea.vmem %s3, %s223
        // Predicated region
        $region37: #{tpu_custom_call.1} parent=31 // pred_check
          %p225 = pneg %p104
        $region38: #{tpu_custom_call.1} parent=31 // pred_check_branch
          %227 = sbr.rel (%p225) target = $region40
        $region39: #{tpu_custom_call.1} parent=31 // pred_region
          _
        $region40: #{tpu_custom_call.1} parent=31 // pred_fallthru
          _
      $region32: #{tpu_custom_call.1} parent=5 // pred_fallthru
        _
      %p228 = scmp.le.s32.totalorder 2, %s13
      // Predicated region
      $region41: #{tpu_custom_call.1} parent=5 // pred_check
        %p229 = pneg %p228
      $region42: #{tpu_custom_call.1} parent=5 // pred_check_branch
        %231 = sbr.rel (%p229) target = $region44
      $region43: #{tpu_custom_call.1} parent=5 // pred_region
        %s232 = ssub.s32 %s13, 2
        // Predicated region
        $region45: #{tpu_custom_call.1} parent=43 // pred_check
          %p233 = pneg %p110
        $region46: #{tpu_custom_call.1} parent=43 // pred_check_branch
          %235 = sbr.rel (%p233) target = $region48
        $region47: #{tpu_custom_call.1} parent=43 // pred_region
          %p236 = scmp.lt.s32.totalorder %s19, 1
          %s237 = scalar_select %p236, %s19, 1
          %s238 = smul.addr %s237, 8
          %s239 = scalar_lea.vmem %s3, %s238
        $region48: #{tpu_custom_call.1} parent=43 // pred_fallthru
          _
      $region44: #{tpu_custom_call.1} parent=5 // pred_fallthru
        _
    $region6: #{tpu_custom_call.1} parent=1 // loop_footer
      %s17 = sadd.s32 1, %s13
    $region7: #{tpu_custom_call.1} parent=1 // loop_footer_branch
      %12 = sbr.rel target = $region3
    $region8: #{tpu_custom_call.1} parent=1 // loop_exit
      _
    %240 = vsyncpa [#allocation4], 1
    %s241 = scalar_lea.sflag [#allocation4], 1
    %242 = vsyncpa %s241, 1

</llo_original>
